<compile_context>
chip_gen: v7x
topology: tpu7x:2x2x1
jax: 0.10.0
libtpu: 0.0.40
codegen_flags: <defaults>
</compile_context>

<pallas_src>
import jax
import jax.numpy as jnp
from jax.experimental import pallas as pl
from jax.experimental.pallas import tpu as pltpu

_LANE = 128


def _mlp_sin_kernel(x_ref,
                    w1_ref, b1_ref,
                    w2_ref, b2_ref,
                    w3_ref, b3_ref,
                    w4_ref, b4_ref,
                    w5_ref, b5_ref,
                    o_ref):
    h = x_ref[...]
    h = jnp.sin(jnp.dot(h, w1_ref[...], preferred_element_type=jnp.float32) + b1_ref[...])
    h = jnp.sin(jnp.dot(h, w2_ref[...], preferred_element_type=jnp.float32) + b2_ref[...])
    h = jnp.sin(jnp.dot(h, w3_ref[...], preferred_element_type=jnp.float32) + b3_ref[...])
    h = jnp.sin(jnp.dot(h, w4_ref[...], preferred_element_type=jnp.float32) + b4_ref[...])
    h = jnp.dot(h, w5_ref[...], preferred_element_type=jnp.float32) + b5_ref[...]
    o_ref[...] = h.astype(o_ref.dtype)


def ann_sin_forward(x, params, *, tile_b=None):
    """x: [B, in_neuron] float32.  params: dict with w1..w5 ([in,out]) and b1..b5 ([1,out])."""
    B, in_dim = x.shape
    out_dim = params["w5"].shape[1]

    # Pick the largest MXU-friendly batch tile that divides B; fall back to B
    # itself for small batches (single grid step).
    if tile_b is None:
        tile_b = B
        for cand in (512, 256, 128):
            if B % cand == 0:
                tile_b = cand
                break
    assert B % tile_b == 0, "batch must be divisible by tile_b"

    # Lane-dense output: pad the final layer to a multiple of 128 lanes so the
    # output store is a full (unmasked) vst; slice the real columns afterwards.
    out_pad = max(_LANE, pl.cdiv(out_dim, _LANE) * _LANE)
    w5, b5 = params["w5"], params["b5"]
    if out_pad != out_dim:
        w5 = jnp.pad(w5, ((0, 0), (0, out_pad - out_dim)))
        b5 = jnp.pad(b5, ((0, 0), (0, out_pad - out_dim)))

    def full_spec(shape):
        # whole (small) weight/bias resident for every grid step
        return pl.BlockSpec(shape, lambda i: (0, 0))

    grid = (B // tile_b,)
    in_specs = [
        pl.BlockSpec((tile_b, in_dim), lambda i: (i, 0)),         # x tile
        full_spec(params["w1"].shape), full_spec(params["b1"].shape),
        full_spec(params["w2"].shape), full_spec(params["b2"].shape),
        full_spec(params["w3"].shape), full_spec(params["b3"].shape),
        full_spec(params["w4"].shape), full_spec(params["b4"].shape),
        full_spec(w5.shape), full_spec(b5.shape),
    ]
    out_specs = pl.BlockSpec((tile_b, out_pad), lambda i: (i, 0))

    out = pl.pallas_call(
        _mlp_sin_kernel,
        out_shape=jax.ShapeDtypeStruct((B, out_pad), x.dtype),
        grid_spec=pltpu.PrefetchScalarGridSpec(
            num_scalar_prefetch=0,
            grid=grid,
            in_specs=in_specs,
            out_specs=out_specs,
        ),
        compiler_params=pltpu.CompilerParams(
            dimension_semantics=("parallel",),
            vmem_limit_bytes=32 * 1024 * 1024,
        ),
    )(x,
      params["w1"], params["b1"],
      params["w2"], params["b2"],
      params["w3"], params["b3"],
      params["w4"], params["b4"],
      w5, b5)

    return out[:, :out_dim] if out_pad != out_dim else out


def init_params(key, in_neuron, hidden_neuron, out_neuron):
    """Deterministic init mimicking nn.Linear's uniform(-1/sqrt(fan_in), 1/sqrt(fan_in))."""
    dims = [(in_neuron, hidden_neuron),
            (hidden_neuron, hidden_neuron),
            (hidden_neuron, hidden_neuron),
            (hidden_neuron, hidden_neuron),
            (hidden_neuron, out_neuron)]
    params = {}
    keys = jax.random.split(key, 2 * len(dims))
    for idx, (fan_in, fan_out) in enumerate(dims):
        bound = 1.0 / jnp.sqrt(jnp.float32(fan_in))
        w = jax.random.uniform(keys[2 * idx], (fan_in, fan_out),
                               jnp.float32, -bound, bound)
        b = jax.random.uniform(keys[2 * idx + 1], (1, fan_out),
                               jnp.float32, -bound, bound)
        params[f"w{idx + 1}"] = w
        params[f"b{idx + 1}"] = b
    return params


def ann_sin_reference(x, params):
    h = x
    for i in range(1, 5):
        h = jnp.sin(h @ params[f"w{i}"] + params[f"b{i}"])
    return h @ params["w5"] + params["b5"]


if __name__ == "__main__":
    in_neuron, hidden_neuron, out_neuron = 4, 32, 2
    batch = 16

    key = jax.random.PRNGKey(0)
    k_x, k_p = jax.random.split(key)
    x = jax.random.normal(k_x, (batch, in_neuron), jnp.float32)
    params = init_params(k_p, in_neuron, hidden_neuron, out_neuron)

    out = ann_sin_forward(x, params)          # tile_b auto -> whole batch (1 grid step)
    out = jax.block_until_ready(out)

    ref = ann_sin_reference(x, params)
    assert out.shape == (batch, out_neuron)
    assert jnp.allclose(out, ref, atol=1e-5, rtol=1e-5), "mismatch vs reference"

    print("KERNEL_OK")
</pallas_src>

<mosaic_0001>
module attributes {stable_mosaic.version = 11 : i64} {
  func.func @_mlp_sin_kernel(%arg0: i32, %arg1: memref<16x4xf32, #tpu.memory_space<vmem>>, %arg2: memref<4x32xf32, #tpu.memory_space<vmem>>, %arg3: memref<1x32xf32, #tpu.memory_space<vmem>>, %arg4: memref<32x32xf32, #tpu.memory_space<vmem>>, %arg5: memref<1x32xf32, #tpu.memory_space<vmem>>, %arg6: memref<32x32xf32, #tpu.memory_space<vmem>>, %arg7: memref<1x32xf32, #tpu.memory_space<vmem>>, %arg8: memref<32x32xf32, #tpu.memory_space<vmem>>, %arg9: memref<1x32xf32, #tpu.memory_space<vmem>>, %arg10: memref<32x128xf32, #tpu.memory_space<vmem>>, %arg11: memref<1x128xf32, #tpu.memory_space<vmem>>, %arg12: memref<16x128xf32, #tpu.memory_space<vmem>>) attributes {dimension_semantics = [#tpu.dimension_semantics<parallel>], iteration_bounds = array<i64: 1>, scalar_prefetch = 0 : i64, scratch_operands = 0 : i64, tpu.core_type = #tpu.core_type<tc>, window_params = [{transform_indices = @transform_0, window_bounds = array<i64: 16, 4>}, {pipeline_mode = #tpu.pipeline_mode<synchronous>, transform_indices = @transform_1, window_bounds = array<i64: 4, 32>}, {pipeline_mode = #tpu.pipeline_mode<synchronous>, transform_indices = @transform_2, window_bounds = array<i64: 1, 32>}, {pipeline_mode = #tpu.pipeline_mode<synchronous>, transform_indices = @transform_3, window_bounds = array<i64: 32, 32>}, {pipeline_mode = #tpu.pipeline_mode<synchronous>, transform_indices = @transform_4, window_bounds = array<i64: 1, 32>}, {pipeline_mode = #tpu.pipeline_mode<synchronous>, transform_indices = @transform_5, window_bounds = array<i64: 32, 32>}, {pipeline_mode = #tpu.pipeline_mode<synchronous>, transform_indices = @transform_6, window_bounds = array<i64: 1, 32>}, {pipeline_mode = #tpu.pipeline_mode<synchronous>, transform_indices = @transform_7, window_bounds = array<i64: 32, 32>}, {pipeline_mode = #tpu.pipeline_mode<synchronous>, transform_indices = @transform_8, window_bounds = array<i64: 1, 32>}, {pipeline_mode = #tpu.pipeline_mode<synchronous>, transform_indices = @transform_9, window_bounds = array<i64: 32, 128>}, {pipeline_mode = #tpu.pipeline_mode<synchronous>, transform_indices = @transform_10, window_bounds = array<i64: 1, 128>}, {transform_indices = @transform_11, window_bounds = array<i64: 16, 128>}]} {
    %c0 = arith.constant 0 : index
    %c0_0 = arith.constant 0 : index
    %0 = vector.load %arg1[%c0, %c0_0] : memref<16x4xf32, #tpu.memory_space<vmem>>, vector<16x4xf32>
    %c0_1 = arith.constant 0 : index
    %c0_2 = arith.constant 0 : index
    %1 = vector.load %arg2[%c0_1, %c0_2] : memref<4x32xf32, #tpu.memory_space<vmem>>, vector<4x32xf32>
    %cst = arith.constant dense<0.000000e+00> : vector<16x32xf32>
    %2 = tpu.matmul %0, %1, %cst {dimension_numbers = #tpu.dot_dimension_numbers<[1], [0], [0], [1], [0, 0, 1, 1], [], []>} : vector<16x4xf32>, vector<4x32xf32>, vector<16x32xf32> -> vector<16x32xf32>
    %c0_3 = arith.constant 0 : index
    %c0_4 = arith.constant 0 : index
    %3 = vector.load %arg3[%c0_3, %c0_4] : memref<1x32xf32, #tpu.memory_space<vmem>>, vector<1x32xf32>
    %4 = vector.broadcast %3 : vector<1x32xf32> to vector<16x32xf32>
    %5 = arith.addf %2, %4 : vector<16x32xf32>
    %6 = math.sin %5 : vector<16x32xf32>
    %c0_5 = arith.constant 0 : index
    %c0_6 = arith.constant 0 : index
    %7 = vector.load %arg4[%c0_5, %c0_6] : memref<32x32xf32, #tpu.memory_space<vmem>>, vector<32x32xf32>
    %cst_7 = arith.constant dense<0.000000e+00> : vector<16x32xf32>
    %8 = tpu.matmul %6, %7, %cst_7 {dimension_numbers = #tpu.dot_dimension_numbers<[1], [0], [0], [1], [0, 0, 1, 1], [], []>} : vector<16x32xf32>, vector<32x32xf32>, vector<16x32xf32> -> vector<16x32xf32>
    %c0_8 = arith.constant 0 : index
    %c0_9 = arith.constant 0 : index
    %9 = vector.load %arg5[%c0_8, %c0_9] : memref<1x32xf32, #tpu.memory_space<vmem>>, vector<1x32xf32>
    %10 = vector.broadcast %9 : vector<1x32xf32> to vector<16x32xf32>
    %11 = arith.addf %8, %10 : vector<16x32xf32>
    %12 = math.sin %11 : vector<16x32xf32>
    %c0_10 = arith.constant 0 : index
    %c0_11 = arith.constant 0 : index
    %13 = vector.load %arg6[%c0_10, %c0_11] : memref<32x32xf32, #tpu.memory_space<vmem>>, vector<32x32xf32>
    %cst_12 = arith.constant dense<0.000000e+00> : vector<16x32xf32>
    %14 = tpu.matmul %12, %13, %cst_12 {dimension_numbers = #tpu.dot_dimension_numbers<[1], [0], [0], [1], [0, 0, 1, 1], [], []>} : vector<16x32xf32>, vector<32x32xf32>, vector<16x32xf32> -> vector<16x32xf32>
    %c0_13 = arith.constant 0 : index
    %c0_14 = arith.constant 0 : index
    %15 = vector.load %arg7[%c0_13, %c0_14] : memref<1x32xf32, #tpu.memory_space<vmem>>, vector<1x32xf32>
    %16 = vector.broadcast %15 : vector<1x32xf32> to vector<16x32xf32>
    %17 = arith.addf %14, %16 : vector<16x32xf32>
    %18 = math.sin %17 : vector<16x32xf32>
    %c0_15 = arith.constant 0 : index
    %c0_16 = arith.constant 0 : index
    %19 = vector.load %arg8[%c0_15, %c0_16] : memref<32x32xf32, #tpu.memory_space<vmem>>, vector<32x32xf32>
    %cst_17 = arith.constant dense<0.000000e+00> : vector<16x32xf32>
    %20 = tpu.matmul %18, %19, %cst_17 {dimension_numbers = #tpu.dot_dimension_numbers<[1], [0], [0], [1], [0, 0, 1, 1], [], []>} : vector<16x32xf32>, vector<32x32xf32>, vector<16x32xf32> -> vector<16x32xf32>
    %c0_18 = arith.constant 0 : index
    %c0_19 = arith.constant 0 : index
    %21 = vector.load %arg9[%c0_18, %c0_19] : memref<1x32xf32, #tpu.memory_space<vmem>>, vector<1x32xf32>
    %22 = vector.broadcast %21 : vector<1x32xf32> to vector<16x32xf32>
    %23 = arith.addf %20, %22 : vector<16x32xf32>
    %24 = math.sin %23 : vector<16x32xf32>
    %c0_20 = arith.constant 0 : index
    %c0_21 = arith.constant 0 : index
    %25 = vector.load %arg10[%c0_20, %c0_21] : memref<32x128xf32, #tpu.memory_space<vmem>>, vector<32x128xf32>
    %cst_22 = arith.constant dense<0.000000e+00> : vector<16x128xf32>
    %26 = tpu.matmul %24, %25, %cst_22 {dimension_numbers = #tpu.dot_dimension_numbers<[1], [0], [0], [1], [0, 0, 1, 1], [], []>} : vector<16x32xf32>, vector<32x128xf32>, vector<16x128xf32> -> vector<16x128xf32>
    %c0_23 = arith.constant 0 : index
    %c0_24 = arith.constant 0 : index
    %27 = vector.load %arg11[%c0_23, %c0_24] : memref<1x128xf32, #tpu.memory_space<vmem>>, vector<1x128xf32>
    %28 = vector.broadcast %27 : vector<1x128xf32> to vector<16x128xf32>
    %29 = arith.addf %26, %28 : vector<16x128xf32>
    %c0_25 = arith.constant 0 : index
    %c0_26 = arith.constant 0 : index
    %30 = vector.load %arg12[%c0_25, %c0_26] : memref<16x128xf32, #tpu.memory_space<vmem>>, vector<16x128xf32>
    tpu.vector_store %arg12[%c0_25, %c0_26], %29 {strides = array<i32>} : memref<16x128xf32, #tpu.memory_space<vmem>>, vector<16x128xf32>,
    return
  }
  func.func @transform_0(%arg0: i32) -> (i32, i32) {
    %c0_i32 = arith.constant 0 : i32
    %c0_i32_0 = arith.constant 0 : i32
    return %arg0, %c0_i32 : i32, i32
  }
  func.func @transform_1(%arg0: i32) -> (i32, i32) {
    %c0_i32 = arith.constant 0 : i32
    %c0_i32_0 = arith.constant 0 : i32
    %c0_i32_1 = arith.constant 0 : i32
    return %c0_i32, %c0_i32_0 : i32, i32
  }
  func.func @transform_2(%arg0: i32) -> (i32, i32) {
    %c0_i32 = arith.constant 0 : i32
    %c0_i32_0 = arith.constant 0 : i32
    %c0_i32_1 = arith.constant 0 : i32
    return %c0_i32, %c0_i32_0 : i32, i32
  }
  func.func @transform_3(%arg0: i32) -> (i32, i32) {
    %c0_i32 = arith.constant 0 : i32
    %c0_i32_0 = arith.constant 0 : i32
    %c0_i32_1 = arith.constant 0 : i32
    return %c0_i32, %c0_i32_0 : i32, i32
  }
  func.func @transform_4(%arg0: i32) -> (i32, i32) {
    %c0_i32 = arith.constant 0 : i32
    %c0_i32_0 = arith.constant 0 : i32
    %c0_i32_1 = arith.constant 0 : i32
    return %c0_i32, %c0_i32_0 : i32, i32
  }
  func.func @transform_5(%arg0: i32) -> (i32, i32) {
    %c0_i32 = arith.constant 0 : i32
    %c0_i32_0 = arith.constant 0 : i32
    %c0_i32_1 = arith.constant 0 : i32
    return %c0_i32, %c0_i32_0 : i32, i32
  }
  func.func @transform_6(%arg0: i32) -> (i32, i32) {
    %c0_i32 = arith.constant 0 : i32
    %c0_i32_0 = arith.constant 0 : i32
    %c0_i32_1 = arith.constant 0 : i32
    return %c0_i32, %c0_i32_0 : i32, i32
  }
  func.func @transform_7(%arg0: i32) -> (i32, i32) {
    %c0_i32 = arith.constant 0 : i32
    %c0_i32_0 = arith.constant 0 : i32
    %c0_i32_1 = arith.constant 0 : i32
    return %c0_i32, %c0_i32_0 : i32, i32
  }
  func.func @transform_8(%arg0: i32) -> (i32, i32) {
    %c0_i32 = arith.constant 0 : i32
    %c0_i32_0 = arith.constant 0 : i32
    %c0_i32_1 = arith.constant 0 : i32
    return %c0_i32, %c0_i32_0 : i32, i32
  }
  func.func @transform_9(%arg0: i32) -> (i32, i32) {
    %c0_i32 = arith.constant 0 : i32
    %c0_i32_0 = arith.constant 0 : i32
    %c0_i32_1 = arith.constant 0 : i32
    return %c0_i32, %c0_i32_0 : i32, i32
  }
  func.func @transform_10(%arg0: i32) -> (i32, i32) {
    %c0_i32 = arith.constant 0 : i32
    %c0_i32_0 = arith.constant 0 : i32
    %c0_i32_1 = arith.constant 0 : i32
    return %c0_i32, %c0_i32_0 : i32, i32
  }
  func.func @transform_11(%arg0: i32) -> (i32, i32) {
    %c0_i32 = arith.constant 0 : i32
    %c0_i32_0 = arith.constant 0 : i32
    return %arg0, %c0_i32 : i32, i32
  }
}

</mosaic_0001>

<llo_original>
// kernel: tpu_custom_call.1
$region0: #{tpu_custom_call.1}
  #allocation0 [shape = 'u32[]', space=smem, size = 0x4, offset = 0x4, fixed_abs, tag = 'smem constant byte address 0x4 - core index']
  #allocation1 [shape = 'u32[144,128]{1,0:T(1,128)}', space=vmem, size = 0x12000, scoped, tag = 'internal scratch']
  %s0 = inlined_call_operand.vmem [shape: f32[16,4], index: 0, kind: input, shape index: {}]
  %s1 = inlined_call_operand.vmem [shape: f32[4,32], index: 1, kind: input, shape index: {}]
  %s2 = inlined_call_operand.vmem [shape: f32[1,32], index: 2, kind: input, shape index: {}]
  %s3 = inlined_call_operand.hbm [shape: f32[32,32], index: 3, kind: input, shape index: {}]
  %s4 = inlined_call_operand.vmem [shape: f32[1,32], index: 4, kind: input, shape index: {}]
  %s5 = inlined_call_operand.vmem [shape: f32[32,32], index: 5, kind: input, shape index: {}]
  %s6 = inlined_call_operand.vmem [shape: f32[1,32], index: 6, kind: input, shape index: {}]
  %s7 = inlined_call_operand.hbm [shape: f32[32,32], index: 7, kind: input, shape index: {}]
  %s8 = inlined_call_operand.vmem [shape: f32[1,32], index: 8, kind: input, shape index: {}]
  %s9 = inlined_call_operand.hbm [shape: f32[32,128], index: 9, kind: input, shape index: {}]
  %s10 = inlined_call_operand.vmem [shape: f32[1,128], index: 10, kind: input, shape index: {}]
  %s11 = inlined_call_operand.hbm [shape: f32[16,128], index: 11, kind: output, shape index: {}]
  %s12 = sld [smem:[#allocation0]]
  $region66: #{tpu_custom_call.1} parent=0
    _
  %s14 = ssub.s32 1, %s12
  %s15 = scalar_select 0, %s14, %s12
  $region1: #{tpu_custom_call.1} parent=0
    #allocation2 [shape = 'u8[16384]{0}', space=vmem, size = 0x4000, scoped, tag = 'input window, operand 3, single buffered']
    #allocation3 [shape = 's32[1]{0}', space=sflag, size = 0x4, scoped, tag = 'scoped memory for tpu_custom_call.1']
    #allocation4 [shape = 's32[1]{0}', space=sflag, size = 0x4, scoped, tag = 'scoped memory for tpu_custom_call.1']
    #allocation5 [shape = 'u8[16384]{0}', space=vmem, size = 0x4000, scoped, tag = 'input window, operand 7, single buffered']
    #allocation6 [shape = 's32[1]{0}', space=sflag, size = 0x4, scoped, tag = 'scoped memory for tpu_custom_call.1']
    #allocation7 [shape = 'u8[16384]{0}', space=vmem, size = 0x4000, scoped, tag = 'input window, operand 9, single buffered']
    #allocation8 [shape = 'u8[8192]{0}', space=vmem, size = 0x2000, scoped, tag = 'output window, operand 0, single buffered']
    %16 = vsyncpa [#allocation3], 0
    %17 = vsyncpa [#allocation6], 0
    %18 = vsyncpa [#allocation4], 0
    // Predicated region
    $region2: #{tpu_custom_call.1} parent=1 // pred_check
      _
    $region3: #{tpu_custom_call.1} parent=1 // pred_check_branch
      %20 = sbr.rel (0) target = $region5
    $region4: #{tpu_custom_call.1} parent=1 // pred_region
      _
    $region5: #{tpu_custom_call.1} parent=1 // pred_fallthru
      _
    // Predicated region
    $region6: #{tpu_custom_call.1} parent=1 // pred_check
      _
    $region7: #{tpu_custom_call.1} parent=1 // pred_check_branch
      %22 = sbr.rel (0) target = $region9
    $region8: #{tpu_custom_call.1} parent=1 // pred_region
      _
    $region9: #{tpu_custom_call.1} parent=1 // pred_fallthru
      _
    // Predicated region
    $region10: #{tpu_custom_call.1} parent=1 // pred_check
      _
    $region11: #{tpu_custom_call.1} parent=1 // pred_check_branch
      %24 = sbr.rel (0) target = $region13
    $region12: #{tpu_custom_call.1} parent=1 // pred_region
      _
    $region13: #{tpu_custom_call.1} parent=1 // pred_fallthru
      _
    // Predicated region
    $region14: #{tpu_custom_call.1} parent=1 // pred_check
      _
    $region15: #{tpu_custom_call.1} parent=1 // pred_check_branch
      %26 = sbr.rel (0) target = $region17
    $region16: #{tpu_custom_call.1} parent=1 // pred_region
      %s28 = ssub.s32 512, 512
      %29 = vsyncadd [#allocation3], %s28
      %s30 = sshll.u32 [#allocation2], 4
      %s31 = int_to_ptr.vmem [resolvable:$true] %s30
      %36 = dma.hbm_to_vmem [thread:$0]  %s3, 512, %s31, [#allocation3], 128, 128, 8
    $region17: #{tpu_custom_call.1} parent=1 // pred_fallthru
      _
    // Predicated region
    $region18: #{tpu_custom_call.1} parent=1 // pred_check
      _
    $region19: #{tpu_custom_call.1} parent=1 // pred_check_branch
      %38 = sbr.rel (0) target = $region21
    $region20: #{tpu_custom_call.1} parent=1 // pred_region
      _
    $region21: #{tpu_custom_call.1} parent=1 // pred_fallthru
      _
    // Predicated region
    $region22: #{tpu_custom_call.1} parent=1 // pred_check
      _
    $region23: #{tpu_custom_call.1} parent=1 // pred_check_branch
      %40 = sbr.rel (0) target = $region25
    $region24: #{tpu_custom_call.1} parent=1 // pred_region
      _
    $region25: #{tpu_custom_call.1} parent=1 // pred_fallthru
      _
    // Predicated region
    $region26: #{tpu_custom_call.1} parent=1 // pred_check
      _
    $region27: #{tpu_custom_call.1} parent=1 // pred_check_branch
      %42 = sbr.rel (0) target = $region29
    $region28: #{tpu_custom_call.1} parent=1 // pred_region
      _
    $region29: #{tpu_custom_call.1} parent=1 // pred_fallthru
      _
    // Predicated region
    $region30: #{tpu_custom_call.1} parent=1 // pred_check
      _
    $region31: #{tpu_custom_call.1} parent=1 // pred_check_branch
      %44 = sbr.rel (0) target = $region33
    $region32: #{tpu_custom_call.1} parent=1 // pred_region
      %s46 = ssub.s32 512, 512
      %47 = vsyncadd [#allocation6], %s46
      %s48 = sshll.u32 [#allocation5], 4
      %s49 = int_to_ptr.vmem [resolvable:$true] %s48
      %54 = dma.hbm_to_vmem [thread:$0]  %s7, 512, %s49, [#allocation6], 128, 128, 8
    $region33: #{tpu_custom_call.1} parent=1 // pred_fallthru
      _
    // Predicated region
    $region34: #{tpu_custom_call.1} parent=1 // pred_check
      _
    $region35: #{tpu_custom_call.1} parent=1 // pred_check_branch
      %56 = sbr.rel (0) target = $region37
    $region36: #{tpu_custom_call.1} parent=1 // pred_region
      _
    $region37: #{tpu_custom_call.1} parent=1 // pred_fallthru
      _
    // Predicated region
    $region38: #{tpu_custom_call.1} parent=1 // pred_check
      _
    $region39: #{tpu_custom_call.1} parent=1 // pred_check_branch
      %58 = sbr.rel (0) target = $region41
    $region40: #{tpu_custom_call.1} parent=1 // pred_region
      %s60 = ssub.s32 512, 512
      %61 = vsyncadd [#allocation6], %s60
      %s62 = sshll.u32 [#allocation7], 4
      %s63 = int_to_ptr.vmem [resolvable:$true] %s62
      %68 = dma.hbm_to_vmem [thread:$0]  %s9, 512, %s63, [#allocation6], 128, 128, 8
    $region41: #{tpu_custom_call.1} parent=1 // pred_fallthru
      _
    // Predicated region
    $region42: #{tpu_custom_call.1} parent=1 // pred_check
      _
    $region43: #{tpu_custom_call.1} parent=1 // pred_check_branch
      %70 = sbr.rel (0) target = $region45
    $region44: #{tpu_custom_call.1} parent=1 // pred_region
      _
    $region45: #{tpu_custom_call.1} parent=1 // pred_fallthru
      _
    // Predicated region
    $region46: #{tpu_custom_call.1} parent=1 // pred_check
      _
    $region47: #{tpu_custom_call.1} parent=1 // pred_check_branch
      %72 = sbr.rel (0) target = $region49
    $region48: #{tpu_custom_call.1} parent=1 // pred_region
      %73 = dma.done [#allocation3], 512
    $region49: #{tpu_custom_call.1} parent=1 // pred_fallthru
      _
    // Predicated region
    $region50: #{tpu_custom_call.1} parent=1 // pred_check
      _
    $region51: #{tpu_custom_call.1} parent=1 // pred_check_branch
      %75 = sbr.rel (0) target = $region53
    $region52: #{tpu_custom_call.1} parent=1 // pred_region
      %76 = dma.done [#allocation6], 512
    $region53: #{tpu_custom_call.1} parent=1 // pred_fallthru
      _
    // Predicated region
    $region54: #{tpu_custom_call.1} parent=1 // pred_check
      _
    $region55: #{tpu_custom_call.1} parent=1 // pred_check_branch
      %78 = sbr.rel (0) target = $region57
    $region56: #{tpu_custom_call.1} parent=1 // pred_region
      %79 = dma.done [#allocation6], 512
    $region57: #{tpu_custom_call.1} parent=1 // pred_fallthru
      _
    %v80 = vld [vmem:[%s0] sm:$0xff]
    %v81 = vld [vmem:[%s0 + $0x8] sm:$0xff]
    %v82 = vld [vmem:[%s1] sm:$0xf]
    %v83 = vld [vmem:[%s2] sm:$0x1]
    %v85 = vlaneseq
    %v86 = vshrl.u32 %v85, 7
    %v87 = vsub.s32 0, %v86
    %v88 = vrot.slane %v83, %v87
    %vm90 = vcmask 31744
    %v92 = vsel %vm90, %v80, 0
    %v95 = vsel %vm90, %v81, 0
    %vm97 = vcmask 1043456
    %v99 = vsel %vm97, %v82, 0
    %101 = vmatprep.subr.mxu0 0.0
    %102 = vmatpush1.msra.mxu0 %v99
    %103 = vmatprep.subr.mxu0 0.0
    %104 = vmatpush1.msra.mxu0 0.0
    %105 = vmatprep.subr.mxu0 0.0
    %106 = vmatpush1.msra.mxu0 0.0
    %107 = vmatprep.subr.mxu0 0.0
    %108 = vmatpush1.msra.mxu0 0.0
    %109 = vmatprep.subr.mxu0 0.0
    %110 = vmatpush1.msra.mxu0 0.0
    %111 = vmatprep.subr.mxu0 0.0
    %112 = vmatpush1.msra.mxu0 0.0
    %113 = vmatprep.subr.mxu0 0.0
    %114 = vmatpush1.msra.mxu0 0.0
    %115 = vmatprep.subr.mxu0 0.0
    %116 = vmatpush1.msra.mxu0 0.0
    %117 = vmatprep.subr.mxu0 0.0
    %118 = vmatpush1.msra.mxu0 0.0
    %119 = vmatprep.subr.mxu0 0.0
    %120 = vmatpush1.msra.mxu0 0.0
    %121 = vmatprep.subr.mxu0 0.0
    %122 = vmatpush1.msra.mxu0 0.0
    %123 = vmatprep.subr.mxu0 0.0
    %124 = vmatpush1.msra.mxu0 0.0
    %125 = vmatprep.subr.mxu0 0.0
    %126 = vmatpush1.msra.mxu0 0.0
    %127 = vmatprep.subr.mxu0 0.0
    %128 = vmatpush1.msra.mxu0 0.0
    %129 = vmatprep.subr.mxu0 0.0
    %130 = vmatpush1.msra.mxu0 0.0
    %131 = vmatprep.subr.mxu0 0.0
    %132 = vmatpush1.msra.mxu0 0.0
    %133 = vmatprep.subr.mxu0 0.0
    %134 = vmatpush1.msra.mxu0 0.0
    %135 = vmatprep.subr.mxu0 0.0
    %136 = vmatpush1.msra.mxu0 0.0
    %137 = vmatprep.subr.mxu0 0.0
    %138 = vmatpush1.msra.mxu0 0.0
    %139 = vmatprep.subr.mxu0 0.0
    %140 = vmatpush1.msra.mxu0 0.0
    %141 = vmatprep.subr.mxu0 0.0
    %142 = vmatpush1.msra.mxu0 0.0
    %143 = vmatprep.subr.mxu0 0.0
    %144 = vmatpush1.msra.mxu0 0.0
    %145 = vmatprep.subr.mxu0 0.0
    %146 = vmatpush1.msra.mxu0 0.0
    %147 = vmatprep.subr.mxu0 0.0
    %148 = vmatpush1.msra.mxu0 0.0
    %149 = vmatprep.subr.mxu0 0.0
    %150 = vmatpush1.msra.mxu0 0.0
    %151 = vmatprep.subr.mxu0 0.0
    %152 = vmatpush1.msra.mxu0 0.0
    %153 = vmatprep.subr.mxu0 0.0
    %154 = vmatpush1.msra.mxu0 0.0
    %155 = vmatprep.subr.mxu0 0.0
    %156 = vmatpush1.msra.mxu0 0.0
    %157 = vmatprep.subr.mxu0 0.0
    %158 = vmatpush1.msra.mxu0 0.0
    %159 = vmatprep.subr.mxu0 0.0
    %160 = vmatpush1.msra.mxu0 0.0
    %161 = vmatprep.subr.mxu0 0.0
    %162 = vmatpush1.msra.mxu0 0.0
    %163 = vmatprep.subr.mxu0 0.0
    %164 = vmatpush1.msra.mxu0 0.0
    %165 = vmatprep.mubr.f32.mxu0 0.0
    %166 = vmatmul.mubr.f32.gmra.mrb[0].mxu0 %v92
    %v167 = vpop.f32.mrb[0].mxu0
    %v168 = vadd.f32 %v88, %v167
    %v169 = vpop.f32.mrb[0].mxu0
    %170 = vmatprep.mubr.f32.mxu0 0.0
    %171 = vmatmul.mubr.f32.gmra.mrb[0].mxu0 %v95
    %v172 = vpop.f32.mrb[0].mxu0
    %v173 = vadd.f32 %v88, %v172
    %v174 = vpop.f32.mrb[0].mxu0
    %175 = vdwg.mxu0
    %v176 = vand.u32 2147483647, %v168
    %vm177 = vcmp.le.f32.partialorder %v176, 0.7853982
    %vm178 = vcmp.lt.s32.totalorder %v168, 0
    %v179 = vand.u32 %v168, 2139095040
    %v180 = vshrl.u32 %v179, 23
    %v181 = vsub.s32 %v180, 127
    %v182 = vand.u32 2147483647, %v168
    %v183 = vand.u32 %v182, 8388607
    %v184 = vor.u32 %v183, 8388608
    %v185 = vsub.s32 0, %v184
    %v186 = vadd.s32 %v181, 1
    %vm187 = vcmp.gt.s32.totalorder %v186, 0
    %v188 = vsel %vm187, %v186, 0
    %v189 = vshrl.u32 %v188, 5
    %v190 = vand.u32 %v188, 31
    %v191 = vsub.s32 32, %v190
    %v192 = vshrl.u32 683565275, %v191
    %v193 = vshll.u32 683565275, %v190
    %v194 = vshrl.u32 2475754826, %v191
    %v195 = vor.u32 %v193, %v194
    %v196 = vshll.u32 2475754826, %v190
    %v197 = vshrl.u32 2131351028, %v191
    %v198 = vor.u32 %v196, %v197
    %v199 = vshll.u32 2131351028, %v190
    %v200 = vshrl.u32 2102212464, %v191
    %v201 = vor.u32 %v199, %v200
    %v202 = vshll.u32 2102212464, %v190
    %v203 = vshrl.u32 920167782, %v191
    %v204 = vor.u32 %v202, %v203
    %v205 = vshll.u32 920167782, %v190
    %v206 = vshrl.u32 1326507024, %v191
    %v207 = vor.u32 %v205, %v206
    %vm208 = vcmp.lt.s32.totalorder %v189, 1
    %vm209 = vcmp.lt.s32.totalorder %v189, 2
    %vm210 = vcmp.lt.s32.totalorder %v189, 3
    %vm211 = vcmp.lt.s32.totalorder %v189, 4
    %v212 = vsel %vm208, %v192, %v195
    %v213 = vsel %vm211, %v201, 2102212464
    %v214 = vsel %vm210, %v198, %v213
    %v215 = vsel %vm209, %v212, %v214
    %v216 = vsel %vm208, %v195, %v198
    %v217 = vsel %vm211, %v204, 920167782
    %v218 = vsel %vm210, %v201, %v217
    %v219 = vsel %vm209, %v216, %v218
    %v220 = vsel %vm208, %v198, %v201
    %v221 = vsel %vm211, %v207, 1326507024
    %v222 = vsel %vm210, %v204, %v221
    %v223 = vsel %vm209, %v220, %v222
    %v224 = vshll.u32 %v184, 8
    %v225 = vmul.u32.u64.compose %v224, %v223
    %v226 = vextract.low.u32 %v225
    %v227 = vextract.high.u32 %v225
    %v228 = vmul.u32.u64.compose %v224, %v219
    %v229 = vextract.low.u32 %v228
    %v230 = vextract.high.u32 %v228
    %v231 = vmul.u32 %v224, %v215
    %v232 = vadd.s32 %v227, %v229
    %vm233 = vc.u32 %v227, %v229
    %v234 = vadd.s32 %v230, 1
    %v235 = vsel %vm233, %v234, %v230
    %v236 = vadd.s32 %v231, %v235
    %v237 = vadd.s32 %v236, 536870912
    %v238 = vshrl.u32 %v237, 30
    %v239 = vshll.u32 %v238, 30
    %v240 = vsub.s32 %v236, %v239
    %vm241 = vcmp.lt.s32.totalorder %v240, 0
    %v242 = vsub.s32 0, %v240
    %v243 = vsel %vm241, %v242, %v240
    %v244 = vclz %v243
    %v245 = vsub.s32 %v244, 2
    %vm246 = vcmp.gt.s32.totalorder 0, %v245
    %v247 = vsel %vm246, 0, %v245
    %v248 = vsub.s32 32, %v247
    %v249 = vshll.u32 %v240, %v247
    %v250 = vshrl.u32 %v232, %v248
    %v251 = vor.u32 %v249, %v250
    %v252 = vsub.s32 4294967266, %v247
    %v253 = vadd.s32 %v252, 127
    %v254 = vshll.u32 %v253, 23
    %v255 = vor.u32 4788187, %v254
    %v256 = vand.u32 2147483647, %v255
    %v258 = vcvt.s32.f32 %v251
    %v259 = vmul.f32 %v258, %v256
    %v260 = vxor.u32 %v259, 2147483648
    %v261 = vsel %vm178, %v260, %v259
    %v262 = vsub.s32 4, %v238
    %v263 = vsel %vm178, %v262, %v238
    %v264 = vsel %vm177, %v168, %v261
    %v265 = vsel %vm177, 0, %v263
    %v266 = vcosq.f32.pop %v264
    %v267 = vsinq.f32.pop %v264
    %vm268 = vweird.f32 %v168
    %v269 = vadd.s32 %v265, 3
    %v270 = vand.u32 %v269, 3
    %vm271 = vcmp.lt.s32.totalorder %v270, 2
    %vm272 = vcmp.eq.s32.totalorder %v270, 0
    %v273 = vxor.u32 %v267, 2147483648
    %v274 = vsel %vm272, %v266, %v273
    %vm275 = vcmp.eq.s32.totalorder %v270, 2
    %v276 = vxor.u32 %v266, 2147483648
    %v277 = vsel %vm275, %v276, %v267
    %v278 = vsel %vm271, %v274, %v277
    %v279 = vsel %vm268, nan, %v278
    %v280 = vand.u32 2147483647, %v173
    %vm281 = vcmp.le.f32.partialorder %v280, 0.7853982
    %vm282 = vcmp.lt.s32.totalorder %v173, 0
    %v283 = vand.u32 %v173, 2139095040
    %v284 = vshrl.u32 %v283, 23
    %v285 = vsub.s32 %v284, 127
    %v286 = vand.u32 2147483647, %v173
    %v287 = vand.u32 %v286, 8388607
    %v288 = vor.u32 %v287, 8388608
    %v289 = vsub.s32 0, %v288
    %v290 = vadd.s32 %v285, 1
    %vm291 = vcmp.gt.s32.totalorder %v290, 0
    %v292 = vsel %vm291, %v290, 0
    %v293 = vshrl.u32 %v292, 5
    %v294 = vand.u32 %v292, 31
    %v295 = vsub.s32 32, %v294
    %v296 = vshrl.u32 683565275, %v295
    %v297 = vshll.u32 683565275, %v294
    %v298 = vshrl.u32 2475754826, %v295
    %v299 = vor.u32 %v297, %v298
    %v300 = vshll.u32 2475754826, %v294
    %v301 = vshrl.u32 2131351028, %v295
    %v302 = vor.u32 %v300, %v301
    %v303 = vshll.u32 2131351028, %v294
    %v304 = vshrl.u32 2102212464, %v295
    %v305 = vor.u32 %v303, %v304
    %v306 = vshll.u32 2102212464, %v294
    %v307 = vshrl.u32 920167782, %v295
    %v308 = vor.u32 %v306, %v307
    %v309 = vshll.u32 920167782, %v294
    %v310 = vshrl.u32 1326507024, %v295
    %v311 = vor.u32 %v309, %v310
    %vm312 = vcmp.lt.s32.totalorder %v293, 1
    %vm313 = vcmp.lt.s32.totalorder %v293, 2
    %vm314 = vcmp.lt.s32.totalorder %v293, 3
    %vm315 = vcmp.lt.s32.totalorder %v293, 4
    %v316 = vsel %vm312, %v296, %v299
    %v317 = vsel %vm315, %v305, 2102212464
    %v318 = vsel %vm314, %v302, %v317
    %v319 = vsel %vm313, %v316, %v318
    %v320 = vsel %vm312, %v299, %v302
    %v321 = vsel %vm315, %v308, 920167782
    %v322 = vsel %vm314, %v305, %v321
    %v323 = vsel %vm313, %v320, %v322
    %v324 = vsel %vm312, %v302, %v305
    %v325 = vsel %vm315, %v311, 1326507024
    %v326 = vsel %vm314, %v308, %v325
    %v327 = vsel %vm313, %v324, %v326
    %v328 = vshll.u32 %v288, 8
    %v329 = vmul.u32.u64.compose %v328, %v327
    %v330 = vextract.low.u32 %v329
    %v331 = vextract.high.u32 %v329
    %v332 = vmul.u32.u64.compose %v328, %v323
    %v333 = vextract.low.u32 %v332
    %v334 = vextract.high.u32 %v332
    %v335 = vmul.u32 %v328, %v319
    %v336 = vadd.s32 %v331, %v333
    %vm337 = vc.u32 %v331, %v333
    %v338 = vadd.s32 %v334, 1
    %v339 = vsel %vm337, %v338, %v334
    %v340 = vadd.s32 %v335, %v339
    %v341 = vadd.s32 %v340, 536870912
    %v342 = vshrl.u32 %v341, 30
    %v343 = vshll.u32 %v342, 30
    %v344 = vsub.s32 %v340, %v343
    %vm345 = vcmp.lt.s32.totalorder %v344, 0
    %v346 = vsub.s32 0, %v344
    %v347 = vsel %vm345, %v346, %v344
    %v348 = vclz %v347
    %v349 = vsub.s32 %v348, 2
    %vm350 = vcmp.gt.s32.totalorder 0, %v349
    %v351 = vsel %vm350, 0, %v349
    %v352 = vsub.s32 32, %v351
    %v353 = vshll.u32 %v344, %v351
    %v354 = vshrl.u32 %v336, %v352
    %v355 = vor.u32 %v353, %v354
    %v356 = vsub.s32 4294967266, %v351
    %v357 = vadd.s32 %v356, 127
    %v358 = vshll.u32 %v357, 23
    %v359 = vor.u32 4788187, %v358
    %v360 = vand.u32 2147483647, %v359
    %v362 = vcvt.s32.f32 %v355
    %v363 = vmul.f32 %v362, %v360
    %v364 = vxor.u32 %v363, 2147483648
    %v365 = vsel %vm282, %v364, %v363
    %v366 = vsub.s32 4, %v342
    %v367 = vsel %vm282, %v366, %v342
    %v368 = vsel %vm281, %v173, %v365
    %v369 = vsel %vm281, 0, %v367
    %v370 = vcosq.f32.pop %v368
    %v371 = vsinq.f32.pop %v368
    %vm372 = vweird.f32 %v173
    %v373 = vadd.s32 %v369, 3
    %v374 = vand.u32 %v373, 3
    %vm375 = vcmp.lt.s32.totalorder %v374, 2
    %vm376 = vcmp.eq.s32.totalorder %v374, 0
    %v377 = vxor.u32 %v371, 2147483648
    %v378 = vsel %vm376, %v370, %v377
    %vm379 = vcmp.eq.s32.totalorder %v374, 2
    %v380 = vxor.u32 %v370, 2147483648
    %v381 = vsel %vm379, %v380, %v371
    %v382 = vsel %vm375, %v378, %v381
    %v383 = vsel %vm372, nan, %v382
    %v384 = vld [vmem:[#allocation2] sm:$0xff]
    %v385 = vld [vmem:[#allocation2 + $0x8] sm:$0xff]
    %v386 = vld [vmem:[#allocation2 + $0x10] sm:$0xff]
    %v387 = vld [vmem:[#allocation2 + $0x18] sm:$0xff]
    %v388 = vld [vmem:[%s4] sm:$0x1]
    %v390 = vlaneseq
    %v391 = vshrl.u32 %v390, 7
    %v392 = vsub.s32 0, %v391
    %v393 = vrot.slane %v388, %v392
    %vm395 = vcmask 261120
    %v397 = vsel %vm395, %v279, 0
    %v400 = vsel %vm395, %v383, 0
    %402 = vmatprep.subr.mxu0 0.0
    %403 = vmatpush1.msra.mxu0 %v384
    %404 = vmatprep.subr.mxu0 0.0
    %405 = vmatpush1.msra.mxu0 %v385
    %406 = vmatprep.subr.mxu0 0.0
    %407 = vmatpush1.msra.mxu0 %v386
    %408 = vmatprep.subr.mxu0 0.0
    %409 = vmatpush1.msra.mxu0 %v387
    %410 = vmatprep.subr.mxu0 0.0
    %411 = vmatpush1.msra.mxu0 0.0
    %412 = vmatprep.subr.mxu0 0.0
    %413 = vmatpush1.msra.mxu0 0.0
    %414 = vmatprep.subr.mxu0 0.0
    %415 = vmatpush1.msra.mxu0 0.0
    %416 = vmatprep.subr.mxu0 0.0
    %417 = vmatpush1.msra.mxu0 0.0
    %418 = vmatprep.subr.mxu0 0.0
    %419 = vmatpush1.msra.mxu0 0.0
    %420 = vmatprep.subr.mxu0 0.0
    %421 = vmatpush1.msra.mxu0 0.0
    %422 = vmatprep.subr.mxu0 0.0
    %423 = vmatpush1.msra.mxu0 0.0
    %424 = vmatprep.subr.mxu0 0.0
    %425 = vmatpush1.msra.mxu0 0.0
    %426 = vmatprep.subr.mxu0 0.0
    %427 = vmatpush1.msra.mxu0 0.0
    %428 = vmatprep.subr.mxu0 0.0
    %429 = vmatpush1.msra.mxu0 0.0
    %430 = vmatprep.subr.mxu0 0.0
    %431 = vmatpush1.msra.mxu0 0.0
    %432 = vmatprep.subr.mxu0 0.0
    %433 = vmatpush1.msra.mxu0 0.0
    %434 = vmatprep.subr.mxu0 0.0
    %435 = vmatpush1.msra.mxu0 0.0
    %436 = vmatprep.subr.mxu0 0.0
    %437 = vmatpush1.msra.mxu0 0.0
    %438 = vmatprep.subr.mxu0 0.0
    %439 = vmatpush1.msra.mxu0 0.0
    %440 = vmatprep.subr.mxu0 0.0
    %441 = vmatpush1.msra.mxu0 0.0
    %442 = vmatprep.subr.mxu0 0.0
    %443 = vmatpush1.msra.mxu0 0.0
    %444 = vmatprep.subr.mxu0 0.0
    %445 = vmatpush1.msra.mxu0 0.0
    %446 = vmatprep.subr.mxu0 0.0
    %447 = vmatpush1.msra.mxu0 0.0
    %448 = vmatprep.subr.mxu0 0.0
    %449 = vmatpush1.msra.mxu0 0.0
    %450 = vmatprep.subr.mxu0 0.0
    %451 = vmatpush1.msra.mxu0 0.0
    %452 = vmatprep.subr.mxu0 0.0
    %453 = vmatpush1.msra.mxu0 0.0
    %454 = vmatprep.subr.mxu0 0.0
    %455 = vmatpush1.msra.mxu0 0.0
    %456 = vmatprep.subr.mxu0 0.0
    %457 = vmatpush1.msra.mxu0 0.0
    %458 = vmatprep.subr.mxu0 0.0
    %459 = vmatpush1.msra.mxu0 0.0
    %460 = vmatprep.subr.mxu0 0.0
    %461 = vmatpush1.msra.mxu0 0.0
    %462 = vmatprep.subr.mxu0 0.0
    %463 = vmatpush1.msra.mxu0 0.0
    %464 = vmatprep.subr.mxu0 0.0
    %465 = vmatpush1.msra.mxu0 0.0
    %466 = vmatprep.mubr.f32.mxu0 0.0
    %467 = vmatmul.mubr.f32.gmra.mrb[0].mxu0 %v397
    %v468 = vpop.f32.mrb[0].mxu0
    %v469 = vadd.f32 %v393, %v468
    %v470 = vpop.f32.mrb[0].mxu0
    %471 = vmatprep.mubr.f32.mxu0 0.0
    %472 = vmatmul.mubr.f32.gmra.mrb[0].mxu0 %v400
    %v473 = vpop.f32.mrb[0].mxu0
    %v474 = vadd.f32 %v393, %v473
    %v475 = vpop.f32.mrb[0].mxu0
    %476 = vdwg.mxu0
    %v477 = vand.u32 2147483647, %v469
    %vm478 = vcmp.le.f32.partialorder %v477, 0.7853982
    %vm479 = vcmp.lt.s32.totalorder %v469, 0
    %v480 = vand.u32 %v469, 2139095040
    %v481 = vshrl.u32 %v480, 23
    %v482 = vsub.s32 %v481, 127
    %v483 = vand.u32 2147483647, %v469
    %v484 = vand.u32 %v483, 8388607
    %v485 = vor.u32 %v484, 8388608
    %v486 = vsub.s32 0, %v485
    %v487 = vadd.s32 %v482, 1
    %vm488 = vcmp.gt.s32.totalorder %v487, 0
    %v489 = vsel %vm488, %v487, 0
    %v490 = vshrl.u32 %v489, 5
    %v491 = vand.u32 %v489, 31
    %v492 = vsub.s32 32, %v491
    %v493 = vshrl.u32 683565275, %v492
    %v494 = vshll.u32 683565275, %v491
    %v495 = vshrl.u32 2475754826, %v492
    %v496 = vor.u32 %v494, %v495
    %v497 = vshll.u32 2475754826, %v491
    %v498 = vshrl.u32 2131351028, %v492
    %v499 = vor.u32 %v497, %v498
    %v500 = vshll.u32 2131351028, %v491
    %v501 = vshrl.u32 2102212464, %v492
    %v502 = vor.u32 %v500, %v501
    %v503 = vshll.u32 2102212464, %v491
    %v504 = vshrl.u32 920167782, %v492
    %v505 = vor.u32 %v503, %v504
    %v506 = vshll.u32 920167782, %v491
    %v507 = vshrl.u32 1326507024, %v492
    %v508 = vor.u32 %v506, %v507
    %vm509 = vcmp.lt.s32.totalorder %v490, 1
    %vm510 = vcmp.lt.s32.totalorder %v490, 2
    %vm511 = vcmp.lt.s32.totalorder %v490, 3
    %vm512 = vcmp.lt.s32.totalorder %v490, 4
    %v513 = vsel %vm509, %v493, %v496
    %v514 = vsel %vm512, %v502, 2102212464
    %v515 = vsel %vm511, %v499, %v514
    %v516 = vsel %vm510, %v513, %v515
    %v517 = vsel %vm509, %v496, %v499
    %v518 = vsel %vm512, %v505, 920167782
    %v519 = vsel %vm511, %v502, %v518
    %v520 = vsel %vm510, %v517, %v519
    %v521 = vsel %vm509, %v499, %v502
    %v522 = vsel %vm512, %v508, 1326507024
    %v523 = vsel %vm511, %v505, %v522
    %v524 = vsel %vm510, %v521, %v523
    %v525 = vshll.u32 %v485, 8
    %v526 = vmul.u32.u64.compose %v525, %v524
    %v527 = vextract.low.u32 %v526
    %v528 = vextract.high.u32 %v526
    %v529 = vmul.u32.u64.compose %v525, %v520
    %v530 = vextract.low.u32 %v529
    %v531 = vextract.high.u32 %v529
    %v532 = vmul.u32 %v525, %v516
    %v533 = vadd.s32 %v528, %v530
    %vm534 = vc.u32 %v528, %v530
    %v535 = vadd.s32 %v531, 1
    %v536 = vsel %vm534, %v535, %v531
    %v537 = vadd.s32 %v532, %v536
    %v538 = vadd.s32 %v537, 536870912
    %v539 = vshrl.u32 %v538, 30
    %v540 = vshll.u32 %v539, 30
    %v541 = vsub.s32 %v537, %v540
    %vm542 = vcmp.lt.s32.totalorder %v541, 0
    %v543 = vsub.s32 0, %v541
    %v544 = vsel %vm542, %v543, %v541
    %v545 = vclz %v544
    %v546 = vsub.s32 %v545, 2
    %vm547 = vcmp.gt.s32.totalorder 0, %v546
    %v548 = vsel %vm547, 0, %v546
    %v549 = vsub.s32 32, %v548
    %v550 = vshll.u32 %v541, %v548
    %v551 = vshrl.u32 %v533, %v549
    %v552 = vor.u32 %v550, %v551
    %v553 = vsub.s32 4294967266, %v548
    %v554 = vadd.s32 %v553, 127
    %v555 = vshll.u32 %v554, 23
    %v556 = vor.u32 4788187, %v555
    %v557 = vand.u32 2147483647, %v556
    %v559 = vcvt.s32.f32 %v552
    %v560 = vmul.f32 %v559, %v557
    %v561 = vxor.u32 %v560, 2147483648
    %v562 = vsel %vm479, %v561, %v560
    %v563 = vsub.s32 4, %v539
    %v564 = vsel %vm479, %v563, %v539
    %v565 = vsel %vm478, %v469, %v562
    %v566 = vsel %vm478, 0, %v564
    %v567 = vcosq.f32.pop %v565
    %v568 = vsinq.f32.pop %v565
    %vm569 = vweird.f32 %v469
    %v570 = vadd.s32 %v566, 3
    %v571 = vand.u32 %v570, 3
    %vm572 = vcmp.lt.s32.totalorder %v571, 2
    %vm573 = vcmp.eq.s32.totalorder %v571, 0
    %v574 = vxor.u32 %v568, 2147483648
    %v575 = vsel %vm573, %v567, %v574
    %vm576 = vcmp.eq.s32.totalorder %v571, 2
    %v577 = vxor.u32 %v567, 2147483648
    %v578 = vsel %vm576, %v577, %v568
    %v579 = vsel %vm572, %v575, %v578
    %v580 = vsel %vm569, nan, %v579
    %v581 = vand.u32 2147483647, %v474
    %vm582 = vcmp.le.f32.partialorder %v581, 0.7853982
    %vm583 = vcmp.lt.s32.totalorder %v474, 0
    %v584 = vand.u32 %v474, 2139095040
    %v585 = vshrl.u32 %v584, 23
    %v586 = vsub.s32 %v585, 127
    %v587 = vand.u32 2147483647, %v474
    %v588 = vand.u32 %v587, 8388607
    %v589 = vor.u32 %v588, 8388608
    %v590 = vsub.s32 0, %v589
    %v591 = vadd.s32 %v586, 1
    %vm592 = vcmp.gt.s32.totalorder %v591, 0
    %v593 = vsel %vm592, %v591, 0
    %v594 = vshrl.u32 %v593, 5
    %v595 = vand.u32 %v593, 31
    %v596 = vsub.s32 32, %v595
    %v597 = vshrl.u32 683565275, %v596
    %v598 = vshll.u32 683565275, %v595
    %v599 = vshrl.u32 2475754826, %v596
    %v600 = vor.u32 %v598, %v599
    %v601 = vshll.u32 2475754826, %v595
    %v602 = vshrl.u32 2131351028, %v596
    %v603 = vor.u32 %v601, %v602
    %v604 = vshll.u32 2131351028, %v595
    %v605 = vshrl.u32 2102212464, %v596
    %v606 = vor.u32 %v604, %v605
    %v607 = vshll.u32 2102212464, %v595
    %v608 = vshrl.u32 920167782, %v596
    %v609 = vor.u32 %v607, %v608
    %v610 = vshll.u32 920167782, %v595
    %v611 = vshrl.u32 1326507024, %v596
    %v612 = vor.u32 %v610, %v611
    %vm613 = vcmp.lt.s32.totalorder %v594, 1
    %vm614 = vcmp.lt.s32.totalorder %v594, 2
    %vm615 = vcmp.lt.s32.totalorder %v594, 3
    %vm616 = vcmp.lt.s32.totalorder %v594, 4
    %v617 = vsel %vm613, %v597, %v600
    %v618 = vsel %vm616, %v606, 2102212464
    %v619 = vsel %vm615, %v603, %v618
    %v620 = vsel %vm614, %v617, %v619
    %v621 = vsel %vm613, %v600, %v603
    %v622 = vsel %vm616, %v609, 920167782
    %v623 = vsel %vm615, %v606, %v622
    %v624 = vsel %vm614, %v621, %v623
    %v625 = vsel %vm613, %v603, %v606
    %v626 = vsel %vm616, %v612, 1326507024
    %v627 = vsel %vm615, %v609, %v626
    %v628 = vsel %vm614, %v625, %v627
    %v629 = vshll.u32 %v589, 8
    %v630 = vmul.u32.u64.compose %v629, %v628
    %v631 = vextract.low.u32 %v630
    %v632 = vextract.high.u32 %v630
    %v633 = vmul.u32.u64.compose %v629, %v624
    %v634 = vextract.low.u32 %v633
    %v635 = vextract.high.u32 %v633
    %v636 = vmul.u32 %v629, %v620
    %v637 = vadd.s32 %v632, %v634
    %vm638 = vc.u32 %v632, %v634
    %v639 = vadd.s32 %v635, 1
    %v640 = vsel %vm638, %v639, %v635
    %v641 = vadd.s32 %v636, %v640
    %v642 = vadd.s32 %v641, 536870912
    %v643 = vshrl.u32 %v642, 30
    %v644 = vshll.u32 %v643, 30
    %v645 = vsub.s32 %v641, %v644
    %vm646 = vcmp.lt.s32.totalorder %v645, 0
    %v647 = vsub.s32 0, %v645
    %v648 = vsel %vm646, %v647, %v645
    %v649 = vclz %v648
    %v650 = vsub.s32 %v649, 2
    %vm651 = vcmp.gt.s32.totalorder 0, %v650
    %v652 = vsel %vm651, 0, %v650
    %v653 = vsub.s32 32, %v652
    %v654 = vshll.u32 %v645, %v652
    %v655 = vshrl.u32 %v637, %v653
    %v656 = vor.u32 %v654, %v655
    %v657 = vsub.s32 4294967266, %v652
    %v658 = vadd.s32 %v657, 127
    %v659 = vshll.u32 %v658, 23
    %v660 = vor.u32 4788187, %v659
    %v661 = vand.u32 2147483647, %v660
    %v663 = vcvt.s32.f32 %v656
    %v664 = vmul.f32 %v663, %v661
    %v665 = vxor.u32 %v664, 2147483648
    %v666 = vsel %vm583, %v665, %v664
    %v667 = vsub.s32 4, %v643
    %v668 = vsel %vm583, %v667, %v643
    %v669 = vsel %vm582, %v474, %v666
    %v670 = vsel %vm582, 0, %v668
    %v671 = vcosq.f32.pop %v669
    %v672 = vsinq.f32.pop %v669
    %vm673 = vweird.f32 %v474
    %v674 = vadd.s32 %v670, 3
    %v675 = vand.u32 %v674, 3
    %vm676 = vcmp.lt.s32.totalorder %v675, 2
    %vm677 = vcmp.eq.s32.totalorder %v675, 0
    %v678 = vxor.u32 %v672, 2147483648
    %v679 = vsel %vm677, %v671, %v678
    %vm680 = vcmp.eq.s32.totalorder %v675, 2
    %v681 = vxor.u32 %v671, 2147483648
    %v682 = vsel %vm680, %v681, %v672
    %v683 = vsel %vm676, %v679, %v682
    %v684 = vsel %vm673, nan, %v683
    %v685 = vld [vmem:[%s5] sm:$0xff]
    %v686 = vld [vmem:[%s5 + $0x8] sm:$0xff]
    %v687 = vld [vmem:[%s5 + $0x10] sm:$0xff]
    %v688 = vld [vmem:[%s5 + $0x18] sm:$0xff]
    %v689 = vld [vmem:[%s6] sm:$0x1]
    %v691 = vlaneseq
    %v692 = vshrl.u32 %v691, 7
    %v693 = vsub.s32 0, %v692
    %v694 = vrot.slane %v689, %v693
    %v697 = vsel %vm395, %v580, 0
    %v700 = vsel %vm395, %v684, 0
    %702 = vmatprep.subr.mxu0 0.0
    %703 = vmatpush1.msra.mxu0 %v685
    %704 = vmatprep.subr.mxu0 0.0
    %705 = vmatpush1.msra.mxu0 %v686
    %706 = vmatprep.subr.mxu0 0.0
    %707 = vmatpush1.msra.mxu0 %v687
    %708 = vmatprep.subr.mxu0 0.0
    %709 = vmatpush1.msra.mxu0 %v688
    %710 = vmatprep.subr.mxu0 0.0
    %711 = vmatpush1.msra.mxu0 0.0
    %712 = vmatprep.subr.mxu0 0.0
    %713 = vmatpush1.msra.mxu0 0.0
    %714 = vmatprep.subr.mxu0 0.0
    %715 = vmatpush1.msra.mxu0 0.0
    %716 = vmatprep.subr.mxu0 0.0
    %717 = vmatpush1.msra.mxu0 0.0
    %718 = vmatprep.subr.mxu0 0.0
    %719 = vmatpush1.msra.mxu0 0.0
    %720 = vmatprep.subr.mxu0 0.0
    %721 = vmatpush1.msra.mxu0 0.0
    %722 = vmatprep.subr.mxu0 0.0
    %723 = vmatpush1.msra.mxu0 0.0
    %724 = vmatprep.subr.mxu0 0.0
    %725 = vmatpush1.msra.mxu0 0.0
    %726 = vmatprep.subr.mxu0 0.0
    %727 = vmatpush1.msra.mxu0 0.0
    %728 = vmatprep.subr.mxu0 0.0
    %729 = vmatpush1.msra.mxu0 0.0
    %730 = vmatprep.subr.mxu0 0.0
    %731 = vmatpush1.msra.mxu0 0.0
    %732 = vmatprep.subr.mxu0 0.0
    %733 = vmatpush1.msra.mxu0 0.0
    %734 = vmatprep.subr.mxu0 0.0
    %735 = vmatpush1.msra.mxu0 0.0
    %736 = vmatprep.subr.mxu0 0.0
    %737 = vmatpush1.msra.mxu0 0.0
    %738 = vmatprep.subr.mxu0 0.0
    %739 = vmatpush1.msra.mxu0 0.0
    %740 = vmatprep.subr.mxu0 0.0
    %741 = vmatpush1.msra.mxu0 0.0
    %742 = vmatprep.subr.mxu0 0.0
    %743 = vmatpush1.msra.mxu0 0.0
    %744 = vmatprep.subr.mxu0 0.0
    %745 = vmatpush1.msra.mxu0 0.0
    %746 = vmatprep.subr.mxu0 0.0
    %747 = vmatpush1.msra.mxu0 0.0
    %748 = vmatprep.subr.mxu0 0.0
    %749 = vmatpush1.msra.mxu0 0.0
    %750 = vmatprep.subr.mxu0 0.0
    %751 = vmatpush1.msra.mxu0 0.0
    %752 = vmatprep.subr.mxu0 0.0
    %753 = vmatpush1.msra.mxu0 0.0
    %754 = vmatprep.subr.mxu0 0.0
    %755 = vmatpush1.msra.mxu0 0.0
    %756 = vmatprep.subr.mxu0 0.0
    %757 = vmatpush1.msra.mxu0 0.0
    %758 = vmatprep.subr.mxu0 0.0
    %759 = vmatpush1.msra.mxu0 0.0
    %760 = vmatprep.subr.mxu0 0.0
    %761 = vmatpush1.msra.mxu0 0.0
    %762 = vmatprep.subr.mxu0 0.0
    %763 = vmatpush1.msra.mxu0 0.0
    %764 = vmatprep.subr.mxu0 0.0
    %765 = vmatpush1.msra.mxu0 0.0
    %766 = vmatprep.mubr.f32.mxu0 0.0
    %767 = vmatmul.mubr.f32.gmra.mrb[0].mxu0 %v697
    %v768 = vpop.f32.mrb[0].mxu0
    %v769 = vadd.f32 %v694, %v768
    %v770 = vpop.f32.mrb[0].mxu0
    %771 = vmatprep.mubr.f32.mxu0 0.0
    %772 = vmatmul.mubr.f32.gmra.mrb[0].mxu0 %v700
    %v773 = vpop.f32.mrb[0].mxu0
    %v774 = vadd.f32 %v694, %v773
    %v775 = vpop.f32.mrb[0].mxu0
    %776 = vdwg.mxu0
    %v777 = vand.u32 2147483647, %v769
    %vm778 = vcmp.le.f32.partialorder %v777, 0.7853982
    %vm779 = vcmp.lt.s32.totalorder %v769, 0
    %v780 = vand.u32 %v769, 2139095040
    %v781 = vshrl.u32 %v780, 23
    %v782 = vsub.s32 %v781, 127
    %v783 = vand.u32 2147483647, %v769
    %v784 = vand.u32 %v783, 8388607
    %v785 = vor.u32 %v784, 8388608
    %v786 = vsub.s32 0, %v785
    %v787 = vadd.s32 %v782, 1
    %vm788 = vcmp.gt.s32.totalorder %v787, 0
    %v789 = vsel %vm788, %v787, 0
    %v790 = vshrl.u32 %v789, 5
    %v791 = vand.u32 %v789, 31
    %v792 = vsub.s32 32, %v791
    %v793 = vshrl.u32 683565275, %v792
    %v794 = vshll.u32 683565275, %v791
    %v795 = vshrl.u32 2475754826, %v792
    %v796 = vor.u32 %v794, %v795
    %v797 = vshll.u32 2475754826, %v791
    %v798 = vshrl.u32 2131351028, %v792
    %v799 = vor.u32 %v797, %v798
    %v800 = vshll.u32 2131351028, %v791
    %v801 = vshrl.u32 2102212464, %v792
    %v802 = vor.u32 %v800, %v801
    %v803 = vshll.u32 2102212464, %v791
    %v804 = vshrl.u32 920167782, %v792
    %v805 = vor.u32 %v803, %v804
    %v806 = vshll.u32 920167782, %v791
    %v807 = vshrl.u32 1326507024, %v792
    %v808 = vor.u32 %v806, %v807
    %vm809 = vcmp.lt.s32.totalorder %v790, 1
    %vm810 = vcmp.lt.s32.totalorder %v790, 2
    %vm811 = vcmp.lt.s32.totalorder %v790, 3
    %vm812 = vcmp.lt.s32.totalorder %v790, 4
    %v813 = vsel %vm809, %v793, %v796
    %v814 = vsel %vm812, %v802, 2102212464
    %v815 = vsel %vm811, %v799, %v814
    %v816 = vsel %vm810, %v813, %v815
    %v817 = vsel %vm809, %v796, %v799
    %v818 = vsel %vm812, %v805, 920167782
    %v819 = vsel %vm811, %v802, %v818
    %v820 = vsel %vm810, %v817, %v819
    %v821 = vsel %vm809, %v799, %v802
    %v822 = vsel %vm812, %v808, 1326507024
    %v823 = vsel %vm811, %v805, %v822
    %v824 = vsel %vm810, %v821, %v823
    %v825 = vshll.u32 %v785, 8
    %v826 = vmul.u32.u64.compose %v825, %v824
    %v827 = vextract.low.u32 %v826
    %v828 = vextract.high.u32 %v826
    %v829 = vmul.u32.u64.compose %v825, %v820
    %v830 = vextract.low.u32 %v829
    %v831 = vextract.high.u32 %v829
    %v832 = vmul.u32 %v825, %v816
    %v833 = vadd.s32 %v828, %v830
    %vm834 = vc.u32 %v828, %v830
    %v835 = vadd.s32 %v831, 1
    %v836 = vsel %vm834, %v835, %v831
    %v837 = vadd.s32 %v832, %v836
    %v838 = vadd.s32 %v837, 536870912
    %v839 = vshrl.u32 %v838, 30
    %v840 = vshll.u32 %v839, 30
    %v841 = vsub.s32 %v837, %v840
    %vm842 = vcmp.lt.s32.totalorder %v841, 0
    %v843 = vsub.s32 0, %v841
    %v844 = vsel %vm842, %v843, %v841
    %v845 = vclz %v844
    %v846 = vsub.s32 %v845, 2
    %vm847 = vcmp.gt.s32.totalorder 0, %v846
    %v848 = vsel %vm847, 0, %v846
    %v849 = vsub.s32 32, %v848
    %v850 = vshll.u32 %v841, %v848
    %v851 = vshrl.u32 %v833, %v849
    %v852 = vor.u32 %v850, %v851
    %v853 = vsub.s32 4294967266, %v848
    %v854 = vadd.s32 %v853, 127
    %v855 = vshll.u32 %v854, 23
    %v856 = vor.u32 4788187, %v855
    %v857 = vand.u32 2147483647, %v856
    %v859 = vcvt.s32.f32 %v852
    %v860 = vmul.f32 %v859, %v857
    %v861 = vxor.u32 %v860, 2147483648
    %v862 = vsel %vm779, %v861, %v860
    %v863 = vsub.s32 4, %v839
    %v864 = vsel %vm779, %v863, %v839
    %v865 = vsel %vm778, %v769, %v862
    %v866 = vsel %vm778, 0, %v864
    %v867 = vcosq.f32.pop %v865
    %v868 = vsinq.f32.pop %v865
    %vm869 = vweird.f32 %v769
    %v870 = vadd.s32 %v866, 3
    %v871 = vand.u32 %v870, 3
    %vm872 = vcmp.lt.s32.totalorder %v871, 2
    %vm873 = vcmp.eq.s32.totalorder %v871, 0
    %v874 = vxor.u32 %v868, 2147483648
    %v875 = vsel %vm873, %v867, %v874
    %vm876 = vcmp.eq.s32.totalorder %v871, 2
    %v877 = vxor.u32 %v867, 2147483648
    %v878 = vsel %vm876, %v877, %v868
    %v879 = vsel %vm872, %v875, %v878
    %v880 = vsel %vm869, nan, %v879
    %v881 = vand.u32 2147483647, %v774
    %vm882 = vcmp.le.f32.partialorder %v881, 0.7853982
    %vm883 = vcmp.lt.s32.totalorder %v774, 0
    %v884 = vand.u32 %v774, 2139095040
    %v885 = vshrl.u32 %v884, 23
    %v886 = vsub.s32 %v885, 127
    %v887 = vand.u32 2147483647, %v774
    %v888 = vand.u32 %v887, 8388607
    %v889 = vor.u32 %v888, 8388608
    %v890 = vsub.s32 0, %v889
    %v891 = vadd.s32 %v886, 1
    %vm892 = vcmp.gt.s32.totalorder %v891, 0
    %v893 = vsel %vm892, %v891, 0
    %v894 = vshrl.u32 %v893, 5
    %v895 = vand.u32 %v893, 31
    %v896 = vsub.s32 32, %v895
    %v897 = vshrl.u32 683565275, %v896
    %v898 = vshll.u32 683565275, %v895
    %v899 = vshrl.u32 2475754826, %v896
    %v900 = vor.u32 %v898, %v899
    %v901 = vshll.u32 2475754826, %v895
    %v902 = vshrl.u32 2131351028, %v896
    %v903 = vor.u32 %v901, %v902
    %v904 = vshll.u32 2131351028, %v895
    %v905 = vshrl.u32 2102212464, %v896
    %v906 = vor.u32 %v904, %v905
    %v907 = vshll.u32 2102212464, %v895
    %v908 = vshrl.u32 920167782, %v896
    %v909 = vor.u32 %v907, %v908
    %v910 = vshll.u32 920167782, %v895
    %v911 = vshrl.u32 1326507024, %v896
    %v912 = vor.u32 %v910, %v911
    %vm913 = vcmp.lt.s32.totalorder %v894, 1
    %vm914 = vcmp.lt.s32.totalorder %v894, 2
    %vm915 = vcmp.lt.s32.totalorder %v894, 3
    %vm916 = vcmp.lt.s32.totalorder %v894, 4
    %v917 = vsel %vm913, %v897, %v900
    %v918 = vsel %vm916, %v906, 2102212464
    %v919 = vsel %vm915, %v903, %v918
    %v920 = vsel %vm914, %v917, %v919
    %v921 = vsel %vm913, %v900, %v903
    %v922 = vsel %vm916, %v909, 920167782
    %v923 = vsel %vm915, %v906, %v922
    %v924 = vsel %vm914, %v921, %v923
    %v925 = vsel %vm913, %v903, %v906
    %v926 = vsel %vm916, %v912, 1326507024
    %v927 = vsel %vm915, %v909, %v926
    %v928 = vsel %vm914, %v925, %v927
    %v929 = vshll.u32 %v889, 8
    %v930 = vmul.u32.u64.compose %v929, %v928
    %v931 = vextract.low.u32 %v930
    %v932 = vextract.high.u32 %v930
    %v933 = vmul.u32.u64.compose %v929, %v924
    %v934 = vextract.low.u32 %v933
    %v935 = vextract.high.u32 %v933
    %v936 = vmul.u32 %v929, %v920
    %v937 = vadd.s32 %v932, %v934
    %vm938 = vc.u32 %v932, %v934
    %v939 = vadd.s32 %v935, 1
    %v940 = vsel %vm938, %v939, %v935
    %v941 = vadd.s32 %v936, %v940
    %v942 = vadd.s32 %v941, 536870912
    %v943 = vshrl.u32 %v942, 30
    %v944 = vshll.u32 %v943, 30
    %v945 = vsub.s32 %v941, %v944
    %vm946 = vcmp.lt.s32.totalorder %v945, 0
    %v947 = vsub.s32 0, %v945
    %v948 = vsel %vm946, %v947, %v945
    %v949 = vclz %v948
    %v950 = vsub.s32 %v949, 2
    %vm951 = vcmp.gt.s32.totalorder 0, %v950
    %v952 = vsel %vm951, 0, %v950
    %v953 = vsub.s32 32, %v952
    %v954 = vshll.u32 %v945, %v952
    %v955 = vshrl.u32 %v937, %v953
    %v956 = vor.u32 %v954, %v955
    %v957 = vsub.s32 4294967266, %v952
    %v958 = vadd.s32 %v957, 127
    %v959 = vshll.u32 %v958, 23
    %v960 = vor.u32 4788187, %v959
    %v961 = vand.u32 2147483647, %v960
    %v963 = vcvt.s32.f32 %v956
    %v964 = vmul.f32 %v963, %v961
    %v965 = vxor.u32 %v964, 2147483648
    %v966 = vsel %vm883, %v965, %v964
    %v967 = vsub.s32 4, %v943
    %v968 = vsel %vm883, %v967, %v943
    %v969 = vsel %vm882, %v774, %v966
    %v970 = vsel %vm882, 0, %v968
    %v971 = vcosq.f32.pop %v969
    %v972 = vsinq.f32.pop %v969
    %vm973 = vweird.f32 %v774
    %v974 = vadd.s32 %v970, 3
    %v975 = vand.u32 %v974, 3
    %vm976 = vcmp.lt.s32.totalorder %v975, 2
    %vm977 = vcmp.eq.s32.totalorder %v975, 0
    %v978 = vxor.u32 %v972, 2147483648
    %v979 = vsel %vm977, %v971, %v978
    %vm980 = vcmp.eq.s32.totalorder %v975, 2
    %v981 = vxor.u32 %v971, 2147483648
    %v982 = vsel %vm980, %v981, %v972
    %v983 = vsel %vm976, %v979, %v982
    %v984 = vsel %vm973, nan, %v983
    %v985 = vld [vmem:[#allocation5] sm:$0xff]
    %v986 = vld [vmem:[#allocation5 + $0x8] sm:$0xff]
    %v987 = vld [vmem:[#allocation5 + $0x10] sm:$0xff]
    %v988 = vld [vmem:[#allocation5 + $0x18] sm:$0xff]
    %v989 = vld [vmem:[%s8] sm:$0x1]
    %v991 = vlaneseq
    %v992 = vshrl.u32 %v991, 7
    %v993 = vsub.s32 0, %v992
    %v994 = vrot.slane %v989, %v993
    %v997 = vsel %vm395, %v880, 0
    %v1000 = vsel %vm395, %v984, 0
    %1002 = vmatprep.subr.mxu0 0.0
    %1003 = vmatpush1.msra.mxu0 %v985
    %1004 = vmatprep.subr.mxu0 0.0
    %1005 = vmatpush1.msra.mxu0 %v986
    %1006 = vmatprep.subr.mxu0 0.0
    %1007 = vmatpush1.msra.mxu0 %v987
    %1008 = vmatprep.subr.mxu0 0.0
    %1009 = vmatpush1.msra.mxu0 %v988
    %1010 = vmatprep.subr.mxu0 0.0
    %1011 = vmatpush1.msra.mxu0 0.0
    %1012 = vmatprep.subr.mxu0 0.0
    %1013 = vmatpush1.msra.mxu0 0.0
    %1014 = vmatprep.subr.mxu0 0.0
    %1015 = vmatpush1.msra.mxu0 0.0
    %1016 = vmatprep.subr.mxu0 0.0
    %1017 = vmatpush1.msra.mxu0 0.0
    %1018 = vmatprep.subr.mxu0 0.0
    %1019 = vmatpush1.msra.mxu0 0.0
    %1020 = vmatprep.subr.mxu0 0.0
    %1021 = vmatpush1.msra.mxu0 0.0
    %1022 = vmatprep.subr.mxu0 0.0
    %1023 = vmatpush1.msra.mxu0 0.0
    %1024 = vmatprep.subr.mxu0 0.0
    %1025 = vmatpush1.msra.mxu0 0.0
    %1026 = vmatprep.subr.mxu0 0.0
    %1027 = vmatpush1.msra.mxu0 0.0
    %1028 = vmatprep.subr.mxu0 0.0
    %1029 = vmatpush1.msra.mxu0 0.0
    %1030 = vmatprep.subr.mxu0 0.0
    %1031 = vmatpush1.msra.mxu0 0.0
    %1032 = vmatprep.subr.mxu0 0.0
    %1033 = vmatpush1.msra.mxu0 0.0
    %1034 = vmatprep.subr.mxu0 0.0
    %1035 = vmatpush1.msra.mxu0 0.0
    %1036 = vmatprep.subr.mxu0 0.0
    %1037 = vmatpush1.msra.mxu0 0.0
    %1038 = vmatprep.subr.mxu0 0.0
    %1039 = vmatpush1.msra.mxu0 0.0
    %1040 = vmatprep.subr.mxu0 0.0
    %1041 = vmatpush1.msra.mxu0 0.0
    %1042 = vmatprep.subr.mxu0 0.0
    %1043 = vmatpush1.msra.mxu0 0.0
    %1044 = vmatprep.subr.mxu0 0.0
    %1045 = vmatpush1.msra.mxu0 0.0
    %1046 = vmatprep.subr.mxu0 0.0
    %1047 = vmatpush1.msra.mxu0 0.0
    %1048 = vmatprep.subr.mxu0 0.0
    %1049 = vmatpush1.msra.mxu0 0.0
    %1050 = vmatprep.subr.mxu0 0.0
    %1051 = vmatpush1.msra.mxu0 0.0
    %1052 = vmatprep.subr.mxu0 0.0
    %1053 = vmatpush1.msra.mxu0 0.0
    %1054 = vmatprep.subr.mxu0 0.0
    %1055 = vmatpush1.msra.mxu0 0.0
    %1056 = vmatprep.subr.mxu0 0.0
    %1057 = vmatpush1.msra.mxu0 0.0
    %1058 = vmatprep.subr.mxu0 0.0
    %1059 = vmatpush1.msra.mxu0 0.0
    %1060 = vmatprep.subr.mxu0 0.0
    %1061 = vmatpush1.msra.mxu0 0.0
    %1062 = vmatprep.subr.mxu0 0.0
    %1063 = vmatpush1.msra.mxu0 0.0
    %1064 = vmatprep.subr.mxu0 0.0
    %1065 = vmatpush1.msra.mxu0 0.0
    %1066 = vmatprep.mubr.f32.mxu0 0.0
    %1067 = vmatmul.mubr.f32.gmra.mrb[0].mxu0 %v997
    %v1068 = vpop.f32.mrb[0].mxu0
    %v1069 = vadd.f32 %v994, %v1068
    %v1070 = vpop.f32.mrb[0].mxu0
    %1071 = vmatprep.mubr.f32.mxu0 0.0
    %1072 = vmatmul.mubr.f32.gmra.mrb[0].mxu0 %v1000
    %v1073 = vpop.f32.mrb[0].mxu0
    %v1074 = vadd.f32 %v994, %v1073
    %v1075 = vpop.f32.mrb[0].mxu0
    %1076 = vdwg.mxu0
    %v1077 = vand.u32 2147483647, %v1069
    %vm1078 = vcmp.le.f32.partialorder %v1077, 0.7853982
    %vm1079 = vcmp.lt.s32.totalorder %v1069, 0
    %v1080 = vand.u32 %v1069, 2139095040
    %v1081 = vshrl.u32 %v1080, 23
    %v1082 = vsub.s32 %v1081, 127
    %v1083 = vand.u32 2147483647, %v1069
    %v1084 = vand.u32 %v1083, 8388607
    %v1085 = vor.u32 %v1084, 8388608
    %v1086 = vsub.s32 0, %v1085
    %v1087 = vadd.s32 %v1082, 1
    %vm1088 = vcmp.gt.s32.totalorder %v1087, 0
    %v1089 = vsel %vm1088, %v1087, 0
    %v1090 = vshrl.u32 %v1089, 5
    %v1091 = vand.u32 %v1089, 31
    %v1092 = vsub.s32 32, %v1091
    %v1093 = vshrl.u32 683565275, %v1092
    %v1094 = vshll.u32 683565275, %v1091
    %v1095 = vshrl.u32 2475754826, %v1092
    %v1096 = vor.u32 %v1094, %v1095
    %v1097 = vshll.u32 2475754826, %v1091
    %v1098 = vshrl.u32 2131351028, %v1092
    %v1099 = vor.u32 %v1097, %v1098
    %v1100 = vshll.u32 2131351028, %v1091
    %v1101 = vshrl.u32 2102212464, %v1092
    %v1102 = vor.u32 %v1100, %v1101
    %v1103 = vshll.u32 2102212464, %v1091
    %v1104 = vshrl.u32 920167782, %v1092
    %v1105 = vor.u32 %v1103, %v1104
    %v1106 = vshll.u32 920167782, %v1091
    %v1107 = vshrl.u32 1326507024, %v1092
    %v1108 = vor.u32 %v1106, %v1107
    %vm1109 = vcmp.lt.s32.totalorder %v1090, 1
    %vm1110 = vcmp.lt.s32.totalorder %v1090, 2
    %vm1111 = vcmp.lt.s32.totalorder %v1090, 3
    %vm1112 = vcmp.lt.s32.totalorder %v1090, 4
    %v1113 = vsel %vm1109, %v1093, %v1096
    %v1114 = vsel %vm1112, %v1102, 2102212464
    %v1115 = vsel %vm1111, %v1099, %v1114
    %v1116 = vsel %vm1110, %v1113, %v1115
    %v1117 = vsel %vm1109, %v1096, %v1099
    %v1118 = vsel %vm1112, %v1105, 920167782
    %v1119 = vsel %vm1111, %v1102, %v1118
    %v1120 = vsel %vm1110, %v1117, %v1119
    %v1121 = vsel %vm1109, %v1099, %v1102
    %v1122 = vsel %vm1112, %v1108, 1326507024
    %v1123 = vsel %vm1111, %v1105, %v1122
    %v1124 = vsel %vm1110, %v1121, %v1123
    %v1125 = vshll.u32 %v1085, 8
    %v1126 = vmul.u32.u64.compose %v1125, %v1124
    %v1127 = vextract.low.u32 %v1126
    %v1128 = vextract.high.u32 %v1126
    %v1129 = vmul.u32.u64.compose %v1125, %v1120
    %v1130 = vextract.low.u32 %v1129
    %v1131 = vextract.high.u32 %v1129
    %v1132 = vmul.u32 %v1125, %v1116
    %v1133 = vadd.s32 %v1128, %v1130
    %vm1134 = vc.u32 %v1128, %v1130
    %v1135 = vadd.s32 %v1131, 1
    %v1136 = vsel %vm1134, %v1135, %v1131
    %v1137 = vadd.s32 %v1132, %v1136
    %v1138 = vadd.s32 %v1137, 536870912
    %v1139 = vshrl.u32 %v1138, 30
    %v1140 = vshll.u32 %v1139, 30
    %v1141 = vsub.s32 %v1137, %v1140
    %vm1142 = vcmp.lt.s32.totalorder %v1141, 0
    %v1143 = vsub.s32 0, %v1141
    %v1144 = vsel %vm1142, %v1143, %v1141
    %v1145 = vclz %v1144
    %v1146 = vsub.s32 %v1145, 2
    %vm1147 = vcmp.gt.s32.totalorder 0, %v1146
    %v1148 = vsel %vm1147, 0, %v1146
    %v1149 = vsub.s32 32, %v1148
    %v1150 = vshll.u32 %v1141, %v1148
    %v1151 = vshrl.u32 %v1133, %v1149
    %v1152 = vor.u32 %v1150, %v1151
    %v1153 = vsub.s32 4294967266, %v1148
    %v1154 = vadd.s32 %v1153, 127
    %v1155 = vshll.u32 %v1154, 23
    %v1156 = vor.u32 4788187, %v1155
    %v1157 = vand.u32 2147483647, %v1156
    %v1159 = vcvt.s32.f32 %v1152
    %v1160 = vmul.f32 %v1159, %v1157
    %v1161 = vxor.u32 %v1160, 2147483648
    %v1162 = vsel %vm1079, %v1161, %v1160
    %v1163 = vsub.s32 4, %v1139
    %v1164 = vsel %vm1079, %v1163, %v1139
    %v1165 = vsel %vm1078, %v1069, %v1162
    %v1166 = vsel %vm1078, 0, %v1164
    %v1167 = vcosq.f32.pop %v1165
    %v1168 = vsinq.f32.pop %v1165
    %vm1169 = vweird.f32 %v1069
    %v1170 = vadd.s32 %v1166, 3
    %v1171 = vand.u32 %v1170, 3
    %vm1172 = vcmp.lt.s32.totalorder %v1171, 2
    %vm1173 = vcmp.eq.s32.totalorder %v1171, 0
    %v1174 = vxor.u32 %v1168, 2147483648
    %v1175 = vsel %vm1173, %v1167, %v1174
    %vm1176 = vcmp.eq.s32.totalorder %v1171, 2
    %v1177 = vxor.u32 %v1167, 2147483648
    %v1178 = vsel %vm1176, %v1177, %v1168
    %v1179 = vsel %vm1172, %v1175, %v1178
    %v1180 = vsel %vm1169, nan, %v1179
    %v1181 = vand.u32 2147483647, %v1074
    %vm1182 = vcmp.le.f32.partialorder %v1181, 0.7853982
    %vm1183 = vcmp.lt.s32.totalorder %v1074, 0
    %v1184 = vand.u32 %v1074, 2139095040
    %v1185 = vshrl.u32 %v1184, 23
    %v1186 = vsub.s32 %v1185, 127
    %v1187 = vand.u32 2147483647, %v1074
    %v1188 = vand.u32 %v1187, 8388607
    %v1189 = vor.u32 %v1188, 8388608
    %v1190 = vsub.s32 0, %v1189
    %v1191 = vadd.s32 %v1186, 1
    %vm1192 = vcmp.gt.s32.totalorder %v1191, 0
    %v1193 = vsel %vm1192, %v1191, 0
    %v1194 = vshrl.u32 %v1193, 5
    %v1195 = vand.u32 %v1193, 31
    %v1196 = vsub.s32 32, %v1195
    %v1197 = vshrl.u32 683565275, %v1196
    %v1198 = vshll.u32 683565275, %v1195
    %v1199 = vshrl.u32 2475754826, %v1196
    %v1200 = vor.u32 %v1198, %v1199
    %v1201 = vshll.u32 2475754826, %v1195
    %v1202 = vshrl.u32 2131351028, %v1196
    %v1203 = vor.u32 %v1201, %v1202
    %v1204 = vshll.u32 2131351028, %v1195
    %v1205 = vshrl.u32 2102212464, %v1196
    %v1206 = vor.u32 %v1204, %v1205
    %v1207 = vshll.u32 2102212464, %v1195
    %v1208 = vshrl.u32 920167782, %v1196
    %v1209 = vor.u32 %v1207, %v1208
    %v1210 = vshll.u32 920167782, %v1195
    %v1211 = vshrl.u32 1326507024, %v1196
    %v1212 = vor.u32 %v1210, %v1211
    %vm1213 = vcmp.lt.s32.totalorder %v1194, 1
    %vm1214 = vcmp.lt.s32.totalorder %v1194, 2
    %vm1215 = vcmp.lt.s32.totalorder %v1194, 3
    %vm1216 = vcmp.lt.s32.totalorder %v1194, 4
    %v1217 = vsel %vm1213, %v1197, %v1200
    %v1218 = vsel %vm1216, %v1206, 2102212464
    %v1219 = vsel %vm1215, %v1203, %v1218
    %v1220 = vsel %vm1214, %v1217, %v1219
    %v1221 = vsel %vm1213, %v1200, %v1203
    %v1222 = vsel %vm1216, %v1209, 920167782
    %v1223 = vsel %vm1215, %v1206, %v1222
    %v1224 = vsel %vm1214, %v1221, %v1223
    %v1225 = vsel %vm1213, %v1203, %v1206
    %v1226 = vsel %vm1216, %v1212, 1326507024
    %v1227 = vsel %vm1215, %v1209, %v1226
    %v1228 = vsel %vm1214, %v1225, %v1227
    %v1229 = vshll.u32 %v1189, 8
    %v1230 = vmul.u32.u64.compose %v1229, %v1228
    %v1231 = vextract.low.u32 %v1230
    %v1232 = vextract.high.u32 %v1230
    %v1233 = vmul.u32.u64.compose %v1229, %v1224
    %v1234 = vextract.low.u32 %v1233
    %v1235 = vextract.high.u32 %v1233
    %v1236 = vmul.u32 %v1229, %v1220
    %v1237 = vadd.s32 %v1232, %v1234
    %vm1238 = vc.u32 %v1232, %v1234
    %v1239 = vadd.s32 %v1235, 1
    %v1240 = vsel %vm1238, %v1239, %v1235
    %v1241 = vadd.s32 %v1236, %v1240
    %v1242 = vadd.s32 %v1241, 536870912
    %v1243 = vshrl.u32 %v1242, 30
    %v1244 = vshll.u32 %v1243, 30
    %v1245 = vsub.s32 %v1241, %v1244
    %vm1246 = vcmp.lt.s32.totalorder %v1245, 0
    %v1247 = vsub.s32 0, %v1245
    %v1248 = vsel %vm1246, %v1247, %v1245
    %v1249 = vclz %v1248
    %v1250 = vsub.s32 %v1249, 2
    %vm1251 = vcmp.gt.s32.totalorder 0, %v1250
    %v1252 = vsel %vm1251, 0, %v1250
    %v1253 = vsub.s32 32, %v1252
    %v1254 = vshll.u32 %v1245, %v1252
    %v1255 = vshrl.u32 %v1237, %v1253
    %v1256 = vor.u32 %v1254, %v1255
    %v1257 = vsub.s32 4294967266, %v1252
    %v1258 = vadd.s32 %v1257, 127
    %v1259 = vshll.u32 %v1258, 23
    %v1260 = vor.u32 4788187, %v1259
    %v1261 = vand.u32 2147483647, %v1260
    %v1263 = vcvt.s32.f32 %v1256
    %v1264 = vmul.f32 %v1263, %v1261
    %v1265 = vxor.u32 %v1264, 2147483648
    %v1266 = vsel %vm1183, %v1265, %v1264
    %v1267 = vsub.s32 4, %v1243
    %v1268 = vsel %vm1183, %v1267, %v1243
    %v1269 = vsel %vm1182, %v1074, %v1266
    %v1270 = vsel %vm1182, 0, %v1268
    %v1271 = vcosq.f32.pop %v1269
    %v1272 = vsinq.f32.pop %v1269
    %vm1273 = vweird.f32 %v1074
    %v1274 = vadd.s32 %v1270, 3
    %v1275 = vand.u32 %v1274, 3
    %vm1276 = vcmp.lt.s32.totalorder %v1275, 2
    %vm1277 = vcmp.eq.s32.totalorder %v1275, 0
    %v1278 = vxor.u32 %v1272, 2147483648
    %v1279 = vsel %vm1277, %v1271, %v1278
    %vm1280 = vcmp.eq.s32.totalorder %v1275, 2
    %v1281 = vxor.u32 %v1271, 2147483648
    %v1282 = vsel %vm1280, %v1281, %v1272
    %v1283 = vsel %vm1276, %v1279, %v1282
    %v1284 = vsel %vm1273, nan, %v1283
    %v1285 = vld [vmem:[#allocation7] sm:$0xff]
    %v1286 = vld [vmem:[#allocation7 + $0x8] sm:$0xff]
    %v1287 = vld [vmem:[#allocation7 + $0x10] sm:$0xff]
    %v1288 = vld [vmem:[#allocation7 + $0x18] sm:$0xff]
    %v1289 = vld [vmem:[%s10] sm:$0x1]
    %v1291 = vlaneseq
    %v1292 = vshrl.u32 %v1291, 7
    %v1293 = vsub.s32 0, %v1292
    %v1294 = vrot.slane %v1289, %v1293
    %v1297 = vsel %vm395, %v1180, 0
    %v1300 = vsel %vm395, %v1284, 0
    %1302 = vmatprep.subr.mxu0 0.0
    %1303 = vmatpush1.msra.mxu0 %v1285
    %1304 = vmatprep.subr.mxu0 0.0
    %1305 = vmatpush1.msra.mxu0 %v1286
    %1306 = vmatprep.subr.mxu0 0.0
    %1307 = vmatpush1.msra.mxu0 %v1287
    %1308 = vmatprep.subr.mxu0 0.0
    %1309 = vmatpush1.msra.mxu0 %v1288
    %1310 = vmatprep.subr.mxu0 0.0
    %1311 = vmatpush1.msra.mxu0 0.0
    %1312 = vmatprep.subr.mxu0 0.0
    %1313 = vmatpush1.msra.mxu0 0.0
    %1314 = vmatprep.subr.mxu0 0.0
    %1315 = vmatpush1.msra.mxu0 0.0
    %1316 = vmatprep.subr.mxu0 0.0
    %1317 = vmatpush1.msra.mxu0 0.0
    %1318 = vmatprep.subr.mxu0 0.0
    %1319 = vmatpush1.msra.mxu0 0.0
    %1320 = vmatprep.subr.mxu0 0.0
    %1321 = vmatpush1.msra.mxu0 0.0
    %1322 = vmatprep.subr.mxu0 0.0
    %1323 = vmatpush1.msra.mxu0 0.0
    %1324 = vmatprep.subr.mxu0 0.0
    %1325 = vmatpush1.msra.mxu0 0.0
    %1326 = vmatprep.subr.mxu0 0.0
    %1327 = vmatpush1.msra.mxu0 0.0
    %1328 = vmatprep.subr.mxu0 0.0
    %1329 = vmatpush1.msra.mxu0 0.0
    %1330 = vmatprep.subr.mxu0 0.0
    %1331 = vmatpush1.msra.mxu0 0.0
    %1332 = vmatprep.subr.mxu0 0.0
    %1333 = vmatpush1.msra.mxu0 0.0
    %1334 = vmatprep.subr.mxu0 0.0
    %1335 = vmatpush1.msra.mxu0 0.0
    %1336 = vmatprep.subr.mxu0 0.0
    %1337 = vmatpush1.msra.mxu0 0.0
    %1338 = vmatprep.subr.mxu0 0.0
    %1339 = vmatpush1.msra.mxu0 0.0
    %1340 = vmatprep.subr.mxu0 0.0
    %1341 = vmatpush1.msra.mxu0 0.0
    %1342 = vmatprep.subr.mxu0 0.0
    %1343 = vmatpush1.msra.mxu0 0.0
    %1344 = vmatprep.subr.mxu0 0.0
    %1345 = vmatpush1.msra.mxu0 0.0
    %1346 = vmatprep.subr.mxu0 0.0
    %1347 = vmatpush1.msra.mxu0 0.0
    %1348 = vmatprep.subr.mxu0 0.0
    %1349 = vmatpush1.msra.mxu0 0.0
    %1350 = vmatprep.subr.mxu0 0.0
    %1351 = vmatpush1.msra.mxu0 0.0
    %1352 = vmatprep.subr.mxu0 0.0
    %1353 = vmatpush1.msra.mxu0 0.0
    %1354 = vmatprep.subr.mxu0 0.0
    %1355 = vmatpush1.msra.mxu0 0.0
    %1356 = vmatprep.subr.mxu0 0.0
    %1357 = vmatpush1.msra.mxu0 0.0
    %1358 = vmatprep.subr.mxu0 0.0
    %1359 = vmatpush1.msra.mxu0 0.0
    %1360 = vmatprep.subr.mxu0 0.0
    %1361 = vmatpush1.msra.mxu0 0.0
    %1362 = vmatprep.subr.mxu0 0.0
    %1363 = vmatpush1.msra.mxu0 0.0
    %1364 = vmatprep.subr.mxu0 0.0
    %1365 = vmatpush1.msra.mxu0 0.0
    %1366 = vmatprep.mubr.f32.mxu0 0.0
    %1367 = vmatmul.mubr.f32.gmra.mrb[0].mxu0 %v1297
    %v1368 = vpop.f32.mrb[0].mxu0
    %v1369 = vadd.f32 %v1294, %v1368
    %v1370 = vpop.f32.mrb[0].mxu0
    %1371 = vmatprep.mubr.f32.mxu0 0.0
    %1372 = vmatmul.mubr.f32.gmra.mrb[0].mxu0 %v1300
    %v1373 = vpop.f32.mrb[0].mxu0
    %v1374 = vadd.f32 %v1294, %v1373
    %v1375 = vpop.f32.mrb[0].mxu0
    %1376 = vdwg.mxu0
    %1377 = vst [vmem:[#allocation8] sm:$0xff] %v1369
    %1378 = vst [vmem:[#allocation8 + $0x8] sm:$0xff] %v1374
    // Predicated region
    $region58: #{tpu_custom_call.1} parent=1 // pred_check
      _
    $region59: #{tpu_custom_call.1} parent=1 // pred_check_branch
      %1380 = sbr.rel (0) target = $region61
    $region60: #{tpu_custom_call.1} parent=1 // pred_region
      %s1382 = ssub.s32 256, 256
      %1383 = vsyncadd [#allocation4], %s1382
      %s1384 = sshll.u32 [#allocation8], 4
      %s1385 = int_to_ptr.vmem [resolvable:$true] %s1384
      %1390 = dma.vmem_to_hbm [thread:$0]  %s1385, 256, %s11, [#allocation4], 128, 128, 8
    $region61: #{tpu_custom_call.1} parent=1 // pred_fallthru
      _
    // Predicated region
    $region62: #{tpu_custom_call.1} parent=1 // pred_check
      _
    $region63: #{tpu_custom_call.1} parent=1 // pred_check_branch
      %1392 = sbr.rel (0) target = $region65
    $region64: #{tpu_custom_call.1} parent=1 // pred_region
      %1393 = dma.done [#allocation4], 256
    $region65: #{tpu_custom_call.1} parent=1 // pred_fallthru
      _
    %1394 = vsyncpa [#allocation3], 1
    %1395 = vsyncpa [#allocation6], 1
    %1396 = vsyncpa [#allocation4], 1

</llo_original>
